<compile_context>
chip_gen: v7x
topology: tpu7x:2x2x1
jax: 0.10.0
libtpu: 0.0.40
codegen_flags: <defaults>
</compile_context>

<pallas_src>
import jax
import jax.numpy as jnp
from jax.experimental import pallas as pl
from jax.experimental.pallas import tpu as pltpu


def _make_kernel(ch_sizes, out_dtype):
    """Build a kernel closed over the static per-input channel counts."""
    offsets = []
    off = 0
    for ci in ch_sizes:
        offsets.append(off)
        off += ci

    itemsize = jnp.dtype(out_dtype).itemsize
    pack = max(1, (8 * 4) // itemsize)          # sublane pack: 8 f32 / 16 bf16
    aligned = all(ci % pack == 0 for ci in ch_sizes)

    def kernel(*refs):
        # refs = (x_0, ..., x_{k-1}, sb, out)
        *x_refs, sb_ref, o_ref = refs
        scale = sb_ref[:, 0:1]                  # (C, 1) f32 — lane slice only
        shift = sb_ref[:, 1:2]                  # (C, 1) f32

        if aligned and len(x_refs) > 1:
            # Channel boundaries land on sublane-pack boundaries: per-slab
            # stores are already unmasked, skip the concat shuffle.
            for x_ref, start, size in zip(x_refs, offsets, ch_sizes):
                s = scale[start:start + size]
                b = shift[start:start + size]
                y = x_ref[0].astype(jnp.float32) * s + b
                o_ref[0, start:start + size, :] = jnp.maximum(y, 0.0).astype(
                    o_ref.dtype)
        else:
            # Build the full (C, T) slab in registers, then ONE full-block
            # store (unmasked vst) — cheapest output path on all generations.
            if len(x_refs) == 1:
                xcat = x_refs[0][0]
            else:
                xcat = jnp.concatenate([r[0] for r in x_refs], axis=0)
            y = xcat.astype(jnp.float32) * scale + shift
            o_ref[0, :, :] = jnp.maximum(y, 0.0).astype(o_ref.dtype)

    return kernel


def cat_bn_act(x, gamma, beta, running_mean, running_var, eps=1e-3, tile_hw=None):
    """x: NCHW array or tuple of NCHW arrays; BN params over concatenated C."""
    if not isinstance(x, (tuple, list)):
        x = (x,)
    x = tuple(x)
    n, _, h, w = x[0].shape
    ch = tuple(int(xi.shape[1]) for xi in x)
    c = sum(ch)
    hw = h * w
    out_dtype = x[0].dtype
    itemsize = jnp.dtype(out_dtype).itemsize

    # Fold inference BN into per-channel scale/shift; pack into one (C, 2) array.
    scale = (gamma.astype(jnp.float32) /
             jnp.sqrt(running_var.astype(jnp.float32) + eps))
    shift = beta.astype(jnp.float32) - running_mean.astype(jnp.float32) * scale
    sb = jnp.stack([scale, shift], axis=1)                   # (C, 2) f32

    # NCHW -> (N, C_i, H*W): contiguous reshape, no HBM transpose.
    xs = [xi.reshape(n, ci, hw) for xi, ci in zip(x, ch)]

    hw_pad = pl.cdiv(hw, 128) * 128

    if tile_hw is None:
        # Bytes per lane column of live blocks: double-buffered inputs
        # (sum C_i == C channels) + double-buffered output (C channels).
        per_lane = 2 * (2 * c) * itemsize
        budget = 24 * 1024 * 1024      # live-block target (fine on 128 MiB v5e/v6e)
        hard = 40 * 1024 * 1024        # hard ceiling -> safe under v7x 64 MiB phys
        lanes = (budget // per_lane) // 128 * 128
        lanes = max(512, lanes)        # prefer lane-dense >=512 tiles
        while lanes > 128 and lanes * per_lane > hard:
            lanes -= 128
        tile_hw = min(int(lanes), hw_pad)
        # Megacore occupancy: aim for >= 4 total grid steps (v7x has 2 TCs).
        want_tiles = pl.cdiv(4, n)
        if pl.cdiv(hw, tile_hw) < want_tiles:
            tile_hw = max(128, pl.cdiv(pl.cdiv(hw, want_tiles), 128) * 128)
    tile_hw = int(tile_hw)

    grid = (n, pl.cdiv(hw, tile_hw))

    in_specs = [pl.BlockSpec((1, ci, tile_hw), lambda b, j: (b, 0, j))
                for ci in ch]
    in_specs.append(pl.BlockSpec((c, 2), lambda b, j: (0, 0)))   # resident sb
    out_spec = pl.BlockSpec((1, c, tile_hw), lambda b, j: (b, 0, j))

    # Actual need (already includes double-buffering) + headroom for Mosaic
    # internal scratch; capped at 48 MiB so v7x (64 MiB physical) keeps slack.
    vmem_need = 2 * (2 * c) * tile_hw * itemsize + 2 * c * 2 * 4 + (4 << 20)
    vmem_limit = int(min(max(vmem_need, 32 << 20), 48 << 20))

    cost = pl.CostEstimate(
        flops=3 * n * c * hw,                                 # mul, add, relu-max
        transcendentals=0,
        bytes_accessed=2 * n * c * hw * itemsize + c * 2 * 4,
    )

    out_flat = pl.pallas_call(
        _make_kernel(ch, out_dtype),
        out_shape=jax.ShapeDtypeStruct((n, c, hw), out_dtype),
        grid_spec=pltpu.PrefetchScalarGridSpec(
            num_scalar_prefetch=0,
            grid=grid,
            in_specs=in_specs,
            out_specs=out_spec,
        ),
        compiler_params=pltpu.CompilerParams(
            dimension_semantics=("parallel", "parallel"),
            vmem_limit_bytes=vmem_limit,
        ),
        cost_estimate=cost,
    )(*xs, sb)

    # (N, C, H*W) -> NCHW: contiguous reshape, no transpose.
    return out_flat.reshape(n, c, h, w)


def reference(x_tuple, gamma, beta, running_mean, running_var, eps=1e-3):
    x = jnp.concatenate(x_tuple, axis=1)                      # NCHW concat on C
    s = (gamma / jnp.sqrt(running_var + eps)).reshape(1, -1, 1, 1)
    b = (beta - running_mean * gamma / jnp.sqrt(running_var + eps)).reshape(
        1, -1, 1, 1)
    return jnp.maximum(x * s + b, 0.0)


def _bn_params(key, c):
    k3, k4, k5, k6 = jax.random.split(key, 4)
    gamma = 1.0 + 0.1 * jax.random.normal(k3, (c,), dtype=jnp.float32)
    beta = 0.1 * jax.random.normal(k4, (c,), dtype=jnp.float32)
    rmean = 0.1 * jax.random.normal(k5, (c,), dtype=jnp.float32)
    rvar = jnp.abs(1.0 + 0.1 * jax.random.normal(k6, (c,), dtype=jnp.float32))
    return gamma, beta, rmean, rvar


if __name__ == "__main__":
    key = jax.random.PRNGKey(0)
    k1, k2, kp, k1b, k2b, kpb, k1c, k2c, kpc = jax.random.split(key, 9)

    # --- Test 1: module-sized case (N=2, C_i=4 unaligned, H=W=16) ---------
    N, C1, C2, H, W = 2, 4, 4, 16, 16
    C = C1 + C2
    x1 = jax.random.normal(k1, (N, C1, H, W), dtype=jnp.float32)
    x2 = jax.random.normal(k2, (N, C2, H, W), dtype=jnp.float32)
    gamma, beta, rmean, rvar = _bn_params(kp, C)

    out = cat_bn_act((x1, x2), gamma, beta, rmean, rvar)
    out = jax.block_until_ready(out)
    ref = reference((x1, x2), gamma, beta, rmean, rvar)
    assert out.shape == (N, C, H, W)
    assert jnp.allclose(out, ref, atol=1e-5, rtol=1e-5), "mismatch (test 1)"

    # --- Test 2: overhanging spatial tile + non-8-aligned channels --------
    N, C1, C2, H, W = 1, 3, 6, 20, 20        # hw=400, tile_hw=256 -> overhang
    C = C1 + C2
    x1 = jax.random.normal(k1b, (N, C1, H, W), dtype=jnp.float32)
    x2 = jax.random.normal(k2b, (N, C2, H, W), dtype=jnp.float32)
    gamma, beta, rmean, rvar = _bn_params(kpb, C)

    out = cat_bn_act((x1, x2), gamma, beta, rmean, rvar, tile_hw=256)
    out = jax.block_until_ready(out)
    ref = reference((x1, x2), gamma, beta, rmean, rvar)
    assert out.shape == (N, C, H, W)
    assert jnp.allclose(out, ref, atol=1e-5, rtol=1e-5), "mismatch (test 2)"

    # --- Test 3: sublane-aligned channels (per-slab unmasked-store path) --
    N, C1, C2, H, W = 1, 8, 8, 8, 8
    C = C1 + C2
    x1 = jax.random.normal(k1c, (N, C1, H, W), dtype=jnp.float32)
    x2 = jax.random.normal(k2c, (N, C2, H, W), dtype=jnp.float32)
    gamma, beta, rmean, rvar = _bn_params(kpc, C)

    out = cat_bn_act((x1, x2), gamma, beta, rmean, rvar)
    out = jax.block_until_ready(out)
    ref = reference((x1, x2), gamma, beta, rmean, rvar)
    assert out.shape == (N, C, H, W)
    assert jnp.allclose(out, ref, atol=1e-5, rtol=1e-5), "mismatch (test 3)"

    print("KERNEL_OK")
</pallas_src>

<mosaic_0001>
module attributes {stable_mosaic.version = 11 : i64} {
  func.func @kernel(%arg0: i32, %arg1: i32, %arg2: memref<1x4x128xf32, #tpu.memory_space<vmem>>, %arg3: memref<1x4x128xf32, #tpu.memory_space<vmem>>, %arg4: memref<8x2xf32, #tpu.memory_space<vmem>>, %arg5: memref<1x8x128xf32, #tpu.memory_space<vmem>>) attributes {dimension_semantics = [#tpu.dimension_semantics<parallel>, #tpu.dimension_semantics<parallel>], iteration_bounds = array<i64: 2, 2>, scalar_prefetch = 0 : i64, scratch_operands = 0 : i64, tpu.core_type = #tpu.core_type<tc>, window_params = [{transform_indices = @transform_0, window_bounds = array<i64: 1, 4, 128>}, {transform_indices = @transform_1, window_bounds = array<i64: 1, 4, 128>}, {pipeline_mode = #tpu.pipeline_mode<synchronous>, transform_indices = @transform_2, window_bounds = array<i64: 8, 2>}, {transform_indices = @transform_3, window_bounds = array<i64: 1, 8, 128>}]} {
    %c0 = arith.constant 0 : index
    %c0_0 = arith.constant 0 : index
    %0 = vector.load %arg4[%c0, %c0_0] : memref<8x2xf32, #tpu.memory_space<vmem>>, vector<8x1xf32>
    %c0_1 = arith.constant 0 : index
    %c1 = arith.constant 1 : index
    %1 = vector.load %arg4[%c0_1, %c1] : memref<8x2xf32, #tpu.memory_space<vmem>>, vector<8x1xf32>
    %c0_2 = arith.constant 0 : index
    %c0_3 = arith.constant 0 : index
    %c0_4 = arith.constant 0 : index
    %2 = vector.load %arg2[%c0_2, %c0_3, %c0_4] : memref<1x4x128xf32, #tpu.memory_space<vmem>>, vector<1x4x128xf32>
    %3 = vector.shape_cast %2 : vector<1x4x128xf32> to vector<4x128xf32>
    %c0_5 = arith.constant 0 : index
    %c0_6 = arith.constant 0 : index
    %c0_7 = arith.constant 0 : index
    %4 = vector.load %arg3[%c0_5, %c0_6, %c0_7] : memref<1x4x128xf32, #tpu.memory_space<vmem>>, vector<1x4x128xf32>
    %5 = vector.shape_cast %4 : vector<1x4x128xf32> to vector<4x128xf32>
    %6 = tpu.concatenate %3, %5 in 0 : vector<4x128xf32>, vector<4x128xf32> -> vector<8x128xf32>
    %7 = vector.broadcast %0 : vector<8x1xf32> to vector<8x128xf32>
    %8 = arith.mulf %6, %7 : vector<8x128xf32>
    %9 = vector.broadcast %1 : vector<8x1xf32> to vector<8x128xf32>
    %10 = arith.addf %8, %9 : vector<8x128xf32>
    %cst = arith.constant 0.000000e+00 : f32
    %11 = vector.broadcast %cst : f32 to vector<8x128xf32>
    %12 = arith.maximumf %10, %11 : vector<8x128xf32>
    %c0_8 = arith.constant 0 : index
    %c0_9 = arith.constant 0 : index
    %c0_10 = arith.constant 0 : index
    %13 = vector.load %arg5[%c0_8, %c0_9, %c0_10] : memref<1x8x128xf32, #tpu.memory_space<vmem>>, vector<1x8x128xf32>
    %14 = vector.shape_cast %13 : vector<1x8x128xf32> to vector<8x128xf32>
    %15 = vector.shape_cast %12 : vector<8x128xf32> to vector<1x8x128xf32>
    tpu.vector_store %arg5[%c0_8, %c0_9, %c0_10], %15 {strides = array<i32>} : memref<1x8x128xf32, #tpu.memory_space<vmem>>, vector<1x8x128xf32>,
    return
  }
  func.func @transform_0(%arg0: i32, %arg1: i32) -> (i32, i32, i32) {
    %c0_i32 = arith.constant 0 : i32
    %c0_i32_0 = arith.constant 0 : i32
    return %arg0, %c0_i32, %arg1 : i32, i32, i32
  }
  func.func @transform_1(%arg0: i32, %arg1: i32) -> (i32, i32, i32) {
    %c0_i32 = arith.constant 0 : i32
    %c0_i32_0 = arith.constant 0 : i32
    return %arg0, %c0_i32, %arg1 : i32, i32, i32
  }
  func.func @transform_2(%arg0: i32, %arg1: i32) -> (i32, i32) {
    %c0_i32 = arith.constant 0 : i32
    %c0_i32_0 = arith.constant 0 : i32
    %c0_i32_1 = arith.constant 0 : i32
    return %c0_i32, %c0_i32_0 : i32, i32
  }
  func.func @transform_3(%arg0: i32, %arg1: i32) -> (i32, i32, i32) {
    %c0_i32 = arith.constant 0 : i32
    %c0_i32_0 = arith.constant 0 : i32
    return %arg0, %c0_i32, %arg1 : i32, i32, i32
  }
}

</mosaic_0001>

<llo_original>
// kernel: tpu_custom_call.1
$region0: #{tpu_custom_call.1}
  #allocation0 [shape = 'u32[]', space=smem, size = 0x4, offset = 0x4, fixed_abs, tag = 'smem constant byte address 0x4 - core index']
  #allocation1 [shape = 'u32[144,128]{1,0:T(1,128)}', space=vmem, size = 0x12000, scoped, tag = 'internal scratch']
  %s0 = inlined_call_operand.hbm [shape: f32[2,4,256], index: 0, kind: input, shape index: {}]
  %s1 = inlined_call_operand.hbm [shape: f32[2,4,256], index: 1, kind: input, shape index: {}]
  %s2 = inlined_call_operand.vmem [shape: f32[8,2], index: 2, kind: input, shape index: {}]
  %s3 = inlined_call_operand.hbm [shape: f32[2,8,256], index: 3, kind: output, shape index: {}]
  %s4 = sld [smem:[#allocation0]]
  $region53: #{tpu_custom_call.1} parent=0
    _
  %s6 = ssub.s32 1, %s4
  %s7 = scalar_select 0, %s6, %s4
  $region1: #{tpu_custom_call.1} parent=0
    #allocation2 [shape = 'u8[4096]{0}', space=vmem, size = 0x1000, scoped, tag = 'input window, operand 0']
    #allocation3 [shape = 's32[2]{0}', space=sflag, size = 0x8, scoped, tag = 'scoped memory for tpu_custom_call.1']
    #allocation4 [shape = 's32[2]{0}', space=sflag, size = 0x8, scoped, tag = 'scoped memory for tpu_custom_call.1']
    #allocation5 [shape = 'u8[4096]{0}', space=vmem, size = 0x1000, scoped, tag = 'input window, operand 1']
    #allocation6 [shape = 's32[2]{0}', space=sflag, size = 0x8, scoped, tag = 'scoped memory for tpu_custom_call.1']
    #allocation7 [shape = 'u8[8192]{0}', space=vmem, size = 0x2000, scoped, tag = 'output window, operand 0']
    %8 = vsyncpa [#allocation3], 0
    %s9 = scalar_lea.sflag [#allocation3], 1
    %10 = vsyncpa %s9, 0
    %11 = vsyncpa [#allocation6], 0
    %s12 = scalar_lea.sflag [#allocation6], 1
    %13 = vsyncpa %s12, 0
    %14 = vsyncpa [#allocation4], 0
    %s15 = scalar_lea.sflag [#allocation4], 1
    %16 = vsyncpa %s15, 0
    loop: start=0, step=1, limit=6
    $region2: #{tpu_custom_call.1} parent=1 // loop_pre_header
      _
    $region3: #{tpu_custom_call.1} parent=1 // loop_header
      %s18 = sphi 0, %s22
      %p19 = scmp.ge.s32.totalorder %s18, 6
      %s25 = sphi 0, %s37
      %s26 = sphi 0, %s33
      %s27 = sphi 0, %s25
      %s28 = sphi 0, %s26
      %s29 = sphi 0, %s27
      %s30 = sphi 0, %s28
      %s42 = sphi 0, %s44
      %s45 = sphi 0, %s42
      %s46 = sphi 0, %s45
      %s62 = sphi 0, %s46
      %s70 = sphi 0, %s72
      %s73 = sphi 0, %s70
      %s74 = sphi 0, %s73
      %s90 = sphi 0, %s74
      %s94 = sphi 0, %s94
      %s96 = sphi 0, %s94
      %s97 = sphi 0, %s96
      %s111 = sphi 0, %s97
      %s119 = sphi 0, %s121
      %s122 = sphi 0, %s119
      %s123 = sphi 0, %s122
      %s139 = sphi 0, %s123
    $region4: #{tpu_custom_call.1} parent=1 // loop_header_branch
      %21 = sbr.rel (%p19) target = $region8
    $region5: #{tpu_custom_call.1} parent=1 // loop_body
      %s23 = ssub.s32 %s18, 1
      %s24 = ssub.s32 %s18, 2
      %s31 = sadd.s32 1, %s26
      %p32 = scmp.ge.s32.totalorder %s31, 2
      %s33 = scalar_select %p32, 0, %s31
      %s34 = sadd.s32 1, %s25
      %s35 = scalar_select %p32, %s34, %s25
      %p36 = scmp.ge.s32.totalorder %s35, 2
      %s37 = scalar_select %p36, 0, %s35
      %s38 = ssub.s32 %s25, %s37
      %s39 = ssub.s32 %s26, %s33
      %s40 = sor.u32 %s38, %s39
      %p41 = scmp.eq.s32.totalorder %s40, 0
      %s43 = sadd.s32 %s42, 1
      %s44 = scalar_select %p41, %s42, %s43
      %p47 = pneg %p41
      %p48 = scmp.eq.s32.totalorder %s18, 3
      %p49 = por %p47, %p48
      %p50 = scmp.ne.s32.totalorder %s42, %s45
      %p51 = scmp.eq.s32.totalorder %s18, 0
      %p52 = por %p50, %p51
      %p53 = scmp.ne.s32.totalorder %s42, %s45
      %p54 = scmp.eq.s32.totalorder %s23, 3
      %p55 = por %p53, %p54
      %p56 = scmp.ne.s32.totalorder %s45, %s46
      %p57 = scmp.eq.s32.totalorder %s23, 0
      %p58 = por %p56, %p57
      %p59 = scmp.ne.s32.totalorder %s45, %s46
      %p60 = scmp.eq.s32.totalorder %s24, 3
      %p61 = por %p59, %p60
      %p63 = scmp.ne.s32.totalorder %s46, %s62
      %p64 = scmp.eq.s32.totalorder %s24, 0
      %p65 = por %p63, %p64
      %s66 = ssub.s32 %s25, %s37
      %s67 = ssub.s32 %s26, %s33
      %s68 = sor.u32 %s66, %s67
      %p69 = scmp.eq.s32.totalorder %s68, 0
      %s71 = sadd.s32 %s70, 1
      %s72 = scalar_select %p69, %s70, %s71
      %p75 = pneg %p69
      %p76 = scmp.eq.s32.totalorder %s18, 3
      %p77 = por %p75, %p76
      %p78 = scmp.ne.s32.totalorder %s70, %s73
      %p79 = scmp.eq.s32.totalorder %s18, 0
      %p80 = por %p78, %p79
      %p81 = scmp.ne.s32.totalorder %s70, %s73
      %p82 = scmp.eq.s32.totalorder %s23, 3
      %p83 = por %p81, %p82
      %p84 = scmp.ne.s32.totalorder %s73, %s74
      %p85 = scmp.eq.s32.totalorder %s23, 0
      %p86 = por %p84, %p85
      %p87 = scmp.ne.s32.totalorder %s73, %s74
      %p88 = scmp.eq.s32.totalorder %s24, 3
      %p89 = por %p87, %p88
      %p91 = scmp.ne.s32.totalorder %s74, %s90
      %p92 = scmp.eq.s32.totalorder %s24, 0
      %p93 = por %p91, %p92
      %s95 = sadd.s32 %s94, 1
      %p98 = scmp.eq.s32.totalorder %s18, 3
      %p99 = scmp.ne.s32.totalorder %s94, %s96
      %p100 = scmp.eq.s32.totalorder %s18, 0
      %p101 = por %p99, %p100
      %p102 = scmp.ne.s32.totalorder %s94, %s96
      %p103 = scmp.eq.s32.totalorder %s23, 3
      %p104 = por %p102, %p103
      %p105 = scmp.ne.s32.totalorder %s96, %s97
      %p106 = scmp.eq.s32.totalorder %s23, 0
      %p107 = por %p105, %p106
      %p108 = scmp.ne.s32.totalorder %s96, %s97
      %p109 = scmp.eq.s32.totalorder %s24, 3
      %p110 = por %p108, %p109
      %p112 = scmp.ne.s32.totalorder %s97, %s111
      %p113 = scmp.eq.s32.totalorder %s24, 0
      %p114 = por %p112, %p113
      %s115 = ssub.s32 %s25, %s37
      %s116 = ssub.s32 %s26, %s33
      %s117 = sor.u32 %s115, %s116
      %p118 = scmp.eq.s32.totalorder %s117, 0
      %s120 = sadd.s32 %s119, 1
      %s121 = scalar_select %p118, %s119, %s120
      %p124 = pneg %p118
      %p125 = scmp.eq.s32.totalorder %s18, 3
      %p126 = por %p124, %p125
      %p127 = scmp.ne.s32.totalorder %s119, %s122
      %p128 = scmp.eq.s32.totalorder %s18, 0
      %p129 = por %p127, %p128
      %p130 = scmp.ne.s32.totalorder %s119, %s122
      %p131 = scmp.eq.s32.totalorder %s23, 3
      %p132 = por %p130, %p131
      %p133 = scmp.ne.s32.totalorder %s122, %s123
      %p134 = scmp.eq.s32.totalorder %s23, 0
      %p135 = por %p133, %p134
      %p136 = scmp.ne.s32.totalorder %s122, %s123
      %p137 = scmp.eq.s32.totalorder %s24, 3
      %p138 = por %p136, %p137
      %p140 = scmp.ne.s32.totalorder %s123, %s139
      %p141 = scmp.eq.s32.totalorder %s24, 0
      %p142 = por %p140, %p141
      %p143 = scmp.le.s32.totalorder 1, %s18
      %p144 = scmp.lt.s32.totalorder %s18, 5
      %p145 = pnand %p143, %p144
      %p146 = pneg %p145
      // Predicated region
      $region9: #{tpu_custom_call.1} parent=5 // pred_check
        _
      $region10: #{tpu_custom_call.1} parent=5 // pred_check_branch
        %148 = sbr.rel (%p145) target = $region12
      $region11: #{tpu_custom_call.1} parent=5 // pred_region
        %s149 = ssub.s32 %s18, 1
        // Predicated region
        $region13: #{tpu_custom_call.1} parent=11 // pred_check
          %p150 = pneg %p107
        $region14: #{tpu_custom_call.1} parent=11 // pred_check_branch
          %152 = sbr.rel (%p150) target = $region16
        $region15: #{tpu_custom_call.1} parent=11 // pred_region
          _
        $region16: #{tpu_custom_call.1} parent=11 // pred_fallthru
          _
      $region12: #{tpu_custom_call.1} parent=5 // pred_fallthru
        _
      %p153 = scmp.lt.s32.totalorder %s18, 4
      // Predicated region
      $region17: #{tpu_custom_call.1} parent=5 // pred_check
        %p154 = pneg %p153
      $region18: #{tpu_custom_call.1} parent=5 // pred_check_branch
        %156 = sbr.rel (%p154) target = $region20
      $region19: #{tpu_custom_call.1} parent=5 // pred_region
        // Predicated region
        $region21: #{tpu_custom_call.1} parent=19 // pred_check
          %p157 = pneg %p52
        $region22: #{tpu_custom_call.1} parent=19 // pred_check_branch
          %159 = sbr.rel (%p157) target = $region24
        $region23: #{tpu_custom_call.1} parent=19 // pred_region
          %s160 = sand.u32 %s42, 1
          %s161 = scalar_lea.sflag [#allocation3], %s160
          %s162 = sand.u32 %s42, 1
          %s163 = smul.addr %s162, 4
          %s164 = scalar_lea.vmem [#allocation2], %s163
          %s166 = ssub.s32 64, 64
          %167 = vsyncadd %s161, %s166
          %s168 = smul.addr %s25, 2
          %s169 = sadd.s32 %s26, %s168
          %s170 = smul.addr %s169, 64
          %s171 = scalar_lea.hbm %s0, %s170
          %s173 = sshll.u32 %s164, 4
          %s174 = int_to_ptr.vmem [resolvable:$true] %s173
          %176 = dma.hbm_to_vmem [thread:$0]  %s171, 64, %s174, %s161
        $region24: #{tpu_custom_call.1} parent=19 // pred_fallthru
          _
        // Predicated region
        $region25: #{tpu_custom_call.1} parent=19 // pred_check
          %p177 = pneg %p80
        $region26: #{tpu_custom_call.1} parent=19 // pred_check_branch
          %179 = sbr.rel (%p177) target = $region28
        $region27: #{tpu_custom_call.1} parent=19 // pred_region
          %s180 = sand.u32 %s70, 1
          %s181 = scalar_lea.sflag [#allocation6], %s180
          %s182 = sand.u32 %s70, 1
          %s183 = smul.addr %s182, 4
          %s184 = scalar_lea.vmem [#allocation5], %s183
          %s186 = ssub.s32 64, 64
          %187 = vsyncadd %s181, %s186
          %s188 = smul.addr %s25, 2
          %s189 = sadd.s32 %s26, %s188
          %s190 = smul.addr %s189, 64
          %s191 = scalar_lea.hbm %s1, %s190
          %s193 = sshll.u32 %s184, 4
          %s194 = int_to_ptr.vmem [resolvable:$true] %s193
          %196 = dma.hbm_to_vmem [thread:$0]  %s191, 64, %s194, %s181
        $region28: #{tpu_custom_call.1} parent=19 // pred_fallthru
          _
      $region20: #{tpu_custom_call.1} parent=5 // pred_fallthru
        _
      %p197 = scmp.le.s32.totalorder 1, %s18
      %p198 = scmp.lt.s32.totalorder %s18, 5
      %p199 = pnand %p197, %p198
      %p200 = pneg %p199
      // Predicated region
      $region29: #{tpu_custom_call.1} parent=5 // pred_check
        _
      $region30: #{tpu_custom_call.1} parent=5 // pred_check_branch
        %202 = sbr.rel (%p199) target = $region32
      $region31: #{tpu_custom_call.1} parent=5 // pred_region
        %s203 = ssub.s32 %s18, 1
        %s204 = sand.u32 %s45, 1
        %s205 = scalar_lea.sflag [#allocation3], %s204
        %s206 = sand.u32 %s45, 1
        %s207 = smul.addr %s206, 4
        %s208 = scalar_lea.vmem [#allocation2], %s207
        // Predicated region
        $region33: #{tpu_custom_call.1} parent=31 // pred_check
          %p209 = pneg %p58
        $region34: #{tpu_custom_call.1} parent=31 // pred_check_branch
          %211 = sbr.rel (%p209) target = $region36
        $region35: #{tpu_custom_call.1} parent=31 // pred_region
          %212 = dma.done %s205, 64
        $region36: #{tpu_custom_call.1} parent=31 // pred_fallthru
          _
        %s213 = sand.u32 %s73, 1
        %s214 = scalar_lea.sflag [#allocation6], %s213
        %s215 = sand.u32 %s73, 1
        %s216 = smul.addr %s215, 4
        %s217 = scalar_lea.vmem [#allocation5], %s216
        // Predicated region
        $region37: #{tpu_custom_call.1} parent=31 // pred_check
          %p218 = pneg %p86
        $region38: #{tpu_custom_call.1} parent=31 // pred_check_branch
          %220 = sbr.rel (%p218) target = $region40
        $region39: #{tpu_custom_call.1} parent=31 // pred_region
          %221 = dma.done %s214, 64
        $region40: #{tpu_custom_call.1} parent=31 // pred_fallthru
          _
        %s222 = sand.u32 %s45, 1
        %s223 = scalar_lea.sflag [#allocation3], %s222
        %s224 = sand.u32 %s45, 1
        %s225 = smul.addr %s224, 4
        %s226 = scalar_lea.vmem [#allocation2], %s225
        %p227 = pneg %p58
        %p228 = pneg %p55
        %s229 = sand.u32 %s73, 1
        %s230 = scalar_lea.sflag [#allocation6], %s229
        %s231 = sand.u32 %s73, 1
        %s232 = smul.addr %s231, 4
        %s233 = scalar_lea.vmem [#allocation5], %s232
        %p234 = pneg %p86
        %p235 = pneg %p83
        %p236 = pneg %p107
        %p237 = pneg %p104
        %p238 = pneg %p135
        %p239 = pneg %p132
        %s240 = sand.u32 %s122, 1
        %s241 = scalar_lea.sflag [#allocation4], %s240
        %s242 = sand.u32 %s122, 1
        %s243 = smul.addr %s242, 8
        %s244 = scalar_lea.vmem [#allocation7], %s243
        %v245 = vld [vmem:[%s2] sm:$0xff]
        %v246 = vld [vmem:[%s208] sm:$0xf]
        %v247 = vld [vmem:[%s217] sm:$0xf]
        %v249 = vrot.slane %v247, 4
        %vm251 = vcmask 1043456
        %v252 = vsel %vm251, %v246, %v249
        %254 = vset.pattern.permute.xlu0 0
        %255 = vperm.xlu0 %254, %v245
        %v256 = vpop.permute.xlu0 %255
        %v258 = vmul.f32 %v252, %v256
        %259 = vset.pattern.permute.xlu0 1
        %260 = vperm.xlu0 %259, %v245
        %v261 = vpop.permute.xlu0 %260
        %v263 = vadd.f32 %v258, %v261
        %v264 = vmax.f32 %v263, 0.0
        %265 = vst [vmem:[%s244] sm:$0xff] %v264
        %s266 = sand.u32 %s122, 1
        %s267 = scalar_lea.sflag [#allocation4], %s266
        %s268 = sand.u32 %s122, 1
        %s269 = smul.addr %s268, 8
        %s270 = scalar_lea.vmem [#allocation7], %s269
        // Predicated region
        $region41: #{tpu_custom_call.1} parent=31 // pred_check
          %p271 = pneg %p132
        $region42: #{tpu_custom_call.1} parent=31 // pred_check_branch
          %273 = sbr.rel (%p271) target = $region44
        $region43: #{tpu_custom_call.1} parent=31 // pred_region
          %s275 = ssub.s32 128, 128
          %276 = vsyncadd %s267, %s275
          %s277 = smul.addr %s27, 2
          %s278 = sadd.s32 %s28, %s277
          %s279 = smul.addr %s278, 128
          %s280 = scalar_lea.hbm %s3, %s279
          %s282 = sshll.u32 %s270, 4
          %s283 = int_to_ptr.vmem [resolvable:$true] %s282
          %285 = dma.vmem_to_hbm [thread:$0]  %s283, 128, %s280, %s267
        $region44: #{tpu_custom_call.1} parent=31 // pred_fallthru
          _
      $region32: #{tpu_custom_call.1} parent=5 // pred_fallthru
        _
      %p286 = scmp.le.s32.totalorder 2, %s18
      // Predicated region
      $region45: #{tpu_custom_call.1} parent=5 // pred_check
        %p287 = pneg %p286
      $region46: #{tpu_custom_call.1} parent=5 // pred_check_branch
        %289 = sbr.rel (%p287) target = $region48
      $region47: #{tpu_custom_call.1} parent=5 // pred_region
        %s290 = ssub.s32 %s18, 2
        // Predicated region
        $region49: #{tpu_custom_call.1} parent=47 // pred_check
          %p291 = pneg %p138
        $region50: #{tpu_custom_call.1} parent=47 // pred_check_branch
          %293 = sbr.rel (%p291) target = $region52
        $region51: #{tpu_custom_call.1} parent=47 // pred_region
          %s294 = sand.u32 %s123, 1
          %s295 = scalar_lea.sflag [#allocation4], %s294
          %s296 = sand.u32 %s123, 1
          %s297 = smul.addr %s296, 8
          %s298 = scalar_lea.vmem [#allocation7], %s297
          %299 = dma.done %s295, 128
        $region52: #{tpu_custom_call.1} parent=47 // pred_fallthru
          _
      $region48: #{tpu_custom_call.1} parent=5 // pred_fallthru
        _
    $region6: #{tpu_custom_call.1} parent=1 // loop_footer
      %s22 = sadd.s32 1, %s18
    $region7: #{tpu_custom_call.1} parent=1 // loop_footer_branch
      %17 = sbr.rel target = $region3
    $region8: #{tpu_custom_call.1} parent=1 // loop_exit
      _
    %300 = vsyncpa [#allocation3], 1
    %s301 = scalar_lea.sflag [#allocation3], 1
    %302 = vsyncpa %s301, 1
    %303 = vsyncpa [#allocation6], 1
    %s304 = scalar_lea.sflag [#allocation6], 1
    %305 = vsyncpa %s304, 1
    %306 = vsyncpa [#allocation4], 1
    %s307 = scalar_lea.sflag [#allocation4], 1
    %308 = vsyncpa %s307, 1

</llo_original>
